<compile_context>
chip_gen: v7x
topology: tpu7x:2x2x1
jax: 0.10.0
libtpu: 0.0.40
codegen_flags: <defaults>
</compile_context>

<pallas_src>
import jax
import jax.numpy as jnp
from jax.experimental import pallas as pl
from jax.experimental.pallas import tpu as pltpu


# ---------------------------------------------------------------------------
# Kernel: one batch tile of   y = x @ W_eff + b_eff
# ---------------------------------------------------------------------------
def _affine_kernel(x_ref, w_ref, b_ref, o_ref):
    # MXU matmul in the weights' dtype (bf16 by default), f32 accumulation.
    acc = jnp.dot(x_ref[...].astype(w_ref.dtype), w_ref[...],
                  preferred_element_type=jnp.float32)
    # Bias add in f32 (broadcast over the tile rows); one cast at the store.
    o_ref[...] = (acc + b_ref[...]).astype(o_ref.dtype)


# ---------------------------------------------------------------------------
# Pallas wrapper
# ---------------------------------------------------------------------------
def dummy_model_forward(x, w_eff, b_eff, *, block_b=256):
    """x: (B, ds).  w_eff: (ds, ds) in (in, out) layout.  b_eff: (1, ds) f32."""
    B, ds = x.shape
    assert w_eff.shape == (ds, ds) and b_eff.shape == (1, ds)

    # Batch tile: multiple of 8 sublanes; fall back to the full batch when B
    # is not 8-aligned (full-extent blocks are always legal).
    tb = min(block_b, B)
    if tb % 8 != 0:
        tb = B
    grid = (pl.cdiv(B, tb),)

    # Actual VMEM footprint: double-buffered x/out tiles + resident weights.
    itemsize = jnp.dtype(x.dtype).itemsize
    footprint = (2 * 2 * tb * ds * itemsize                       # x + out, 2-deep
                 + ds * ds * jnp.dtype(w_eff.dtype).itemsize      # W_eff resident
                 + ds * jnp.dtype(b_eff.dtype).itemsize)          # b_eff resident
    vmem_limit = int(min(max(4 * footprint, 8 << 20), 64 << 20))

    cost = pl.CostEstimate(
        flops=2 * B * ds * ds,
        transcendentals=0,
        bytes_accessed=(B * ds * itemsize * 2
                        + ds * ds * jnp.dtype(w_eff.dtype).itemsize
                        + ds * jnp.dtype(b_eff.dtype).itemsize),
    )

    return pl.pallas_call(
        _affine_kernel,
        out_shape=jax.ShapeDtypeStruct((B, ds), x.dtype),
        grid=grid,
        in_specs=[
            pl.BlockSpec((tb, ds), lambda i: (i, 0)),   # x: streamed per batch tile
            pl.BlockSpec((ds, ds), lambda i: (0, 0)),   # W_eff: VMEM resident
            pl.BlockSpec((1, ds), lambda i: (0, 0)),    # b_eff: VMEM resident
        ],
        out_specs=pl.BlockSpec((tb, ds), lambda i: (i, 0)),
        compiler_params=pltpu.CompilerParams(
            dimension_semantics=("parallel",),          # megacore-shard the batch
            vmem_limit_bytes=vmem_limit,
        ),
        cost_estimate=cost,
    )(x, w_eff, b_eff)


# ---------------------------------------------------------------------------
# Plain-JAX glue: fold the purely-affine 12-layer DummyModel into one map
# ---------------------------------------------------------------------------
def _fold_affine_chain(layers):
    """Fold [(w, b), ...] (w: (in, out), b: (1, out)) applied left-to-right."""
    w_acc, b_acc = layers[0]
    for w, b in layers[1:]:
        w_acc = w_acc @ w
        b_acc = b_acc @ w + b
    return w_acc, b_acc


def fold_dummy_model(params, compute_dtype=jnp.bfloat16):
    """y = nn3(nn1(x) + nn2(x)) = x @ ((A1 + A2) @ A3) + ((c1 + c2) @ A3 + c3)."""
    a1, c1 = _fold_affine_chain(params["nn1"])   # SubModel2: 6 layers
    a2, c2 = _fold_affine_chain(params["nn2"])   # SubModel1: 3 layers
    a3, c3 = _fold_affine_chain(params["nn3"])   # SubModel1: 3 layers
    w_eff = (a1 + a2) @ a3
    b_eff = (c1 + c2) @ a3 + c3
    # Weights in the MXU compute dtype; bias kept f32 (added post-accumulate).
    return w_eff.astype(compute_dtype), b_eff.astype(jnp.float32)


# ---------------------------------------------------------------------------
# Deterministic params + layer-by-layer reference (pure JAX, f32)
# ---------------------------------------------------------------------------
def _linear_dims(ds, nf):
    return [(ds, nf), (nf, nf), (nf, ds)]


def make_params(key, data_size, hidden_features):
    """Params mirroring DummyModel's 12 nn.Linear layers.

    PyTorch stores Linear weight as (out, in); we generate the transposed
    (in, out) layout directly so forward is x @ W + b.  Init matches PyTorch's
    default U(-1/sqrt(in), 1/sqrt(in)).
    """
    dims = {
        "nn1": _linear_dims(data_size, hidden_features) * 2,  # SubModel2
        "nn2": _linear_dims(data_size, hidden_features),      # SubModel1
        "nn3": _linear_dims(data_size, hidden_features),      # SubModel1
    }
    params = {}
    idx = 0
    for name, layer_dims in dims.items():
        layers = []
        for (din, dout) in layer_dims:
            kw, kb = jax.random.split(jax.random.fold_in(key, idx))
            idx += 1
            bound = 1.0 / float(din) ** 0.5
            w = jax.random.uniform(kw, (din, dout), jnp.float32, -bound, bound)
            b = jax.random.uniform(kb, (1, dout), jnp.float32, -bound, bound)
            layers.append((w, b))
        params[name] = layers
    return params


def reference_forward(x, params):
    """Layer-by-layer DummyModel forward: nn3(nn1(x) + nn2(x))."""
    def run(h, layers):
        for w, b in layers:
            h = h @ w + b
        return h
    x1 = run(x, params["nn1"])
    x2 = run(x, params["nn2"])
    return run(x1 + x2, params["nn3"])


if __name__ == "__main__":
    data_size = 32        # ds
    hidden_features = 64  # nf
    batch = 64

    key = jax.random.PRNGKey(0)
    kx, kp = jax.random.split(key)
    x = jax.random.normal(kx, (batch, data_size), jnp.float32)
    params = make_params(kp, data_size, hidden_features)

    ref = reference_forward(x, params)

    # Default path: bf16 operands (MXU-native), f32 accumulation.
    w_bf16, b_f32 = fold_dummy_model(params, compute_dtype=jnp.bfloat16)
    out_bf16 = dummy_model_forward(x, w_bf16, b_f32, block_b=16)  # grid=(4,)
    out_bf16 = jax.block_until_ready(out_bf16)
    assert out_bf16.shape == (batch, data_size)
    assert jnp.allclose(out_bf16, ref, atol=5e-2, rtol=5e-2)

    # f32-operand path: tight check that the folded kernel matches the
    # layer-by-layer module forward.
    w_f32, b32 = fold_dummy_model(params, compute_dtype=jnp.float32)
    out_f32 = dummy_model_forward(x, w_f32, b32, block_b=16)
    out_f32 = jax.block_until_ready(out_f32)
    assert jnp.allclose(out_f32, ref, atol=1e-3, rtol=1e-3)

    # Single-tile path (tb == B, grid=(1,)): exercises the full-batch fallback.
    out_full = dummy_model_forward(x, w_f32, b32, block_b=256)
    out_full = jax.block_until_ready(out_full)
    assert jnp.allclose(out_full, ref, atol=1e-3, rtol=1e-3)

    print("KERNEL_OK")
</pallas_src>

<mosaic_0001>
module attributes {stable_mosaic.version = 11 : i64} {
  func.func @_affine_kernel(%arg0: i32, %arg1: memref<16x32xf32, #tpu.memory_space<vmem>>, %arg2: memref<32x32xbf16, #tpu.memory_space<vmem>>, %arg3: memref<1x32xf32, #tpu.memory_space<vmem>>, %arg4: memref<16x32xf32, #tpu.memory_space<vmem>>) attributes {dimension_semantics = [#tpu.dimension_semantics<parallel>], iteration_bounds = array<i64: 4>, scalar_prefetch = 0 : i64, scratch_operands = 0 : i64, tpu.core_type = #tpu.core_type<tc>, window_params = [{transform_indices = @transform_0, window_bounds = array<i64: 16, 32>}, {pipeline_mode = #tpu.pipeline_mode<synchronous>, transform_indices = @transform_1, window_bounds = array<i64: 32, 32>}, {pipeline_mode = #tpu.pipeline_mode<synchronous>, transform_indices = @transform_2, window_bounds = array<i64: 1, 32>}, {transform_indices = @transform_3, window_bounds = array<i64: 16, 32>}]} {
    %c0 = arith.constant 0 : index
    %c0_0 = arith.constant 0 : index
    %0 = vector.load %arg1[%c0, %c0_0] : memref<16x32xf32, #tpu.memory_space<vmem>>, vector<16x32xf32>
    %1 = arith.truncf %0 : vector<16x32xf32> to vector<16x32xbf16>
    %c0_1 = arith.constant 0 : index
    %c0_2 = arith.constant 0 : index
    %2 = vector.load %arg2[%c0_1, %c0_2] : memref<32x32xbf16, #tpu.memory_space<vmem>>, vector<32x32xbf16>
    %cst = arith.constant dense<0.000000e+00> : vector<16x32xf32>
    %3 = tpu.matmul %1, %2, %cst {dimension_numbers = #tpu.dot_dimension_numbers<[1], [0], [0], [1], [0, 0, 1, 1], [], []>} : vector<16x32xbf16>, vector<32x32xbf16>, vector<16x32xf32> -> vector<16x32xf32>
    %c0_3 = arith.constant 0 : index
    %c0_4 = arith.constant 0 : index
    %4 = vector.load %arg3[%c0_3, %c0_4] : memref<1x32xf32, #tpu.memory_space<vmem>>, vector<1x32xf32>
    %5 = vector.broadcast %4 : vector<1x32xf32> to vector<16x32xf32>
    %6 = arith.addf %3, %5 : vector<16x32xf32>
    %c0_5 = arith.constant 0 : index
    %c0_6 = arith.constant 0 : index
    %7 = vector.load %arg4[%c0_5, %c0_6] : memref<16x32xf32, #tpu.memory_space<vmem>>, vector<16x32xf32>
    tpu.vector_store %arg4[%c0_5, %c0_6], %6 {strides = array<i32>} : memref<16x32xf32, #tpu.memory_space<vmem>>, vector<16x32xf32>,
    return
  }
  func.func @transform_0(%arg0: i32) -> (i32, i32) {
    %c0_i32 = arith.constant 0 : i32
    %c0_i32_0 = arith.constant 0 : i32
    return %arg0, %c0_i32 : i32, i32
  }
  func.func @transform_1(%arg0: i32) -> (i32, i32) {
    %c0_i32 = arith.constant 0 : i32
    %c0_i32_0 = arith.constant 0 : i32
    %c0_i32_1 = arith.constant 0 : i32
    return %c0_i32, %c0_i32_0 : i32, i32
  }
  func.func @transform_2(%arg0: i32) -> (i32, i32) {
    %c0_i32 = arith.constant 0 : i32
    %c0_i32_0 = arith.constant 0 : i32
    %c0_i32_1 = arith.constant 0 : i32
    return %c0_i32, %c0_i32_0 : i32, i32
  }
  func.func @transform_3(%arg0: i32) -> (i32, i32) {
    %c0_i32 = arith.constant 0 : i32
    %c0_i32_0 = arith.constant 0 : i32
    return %arg0, %c0_i32 : i32, i32
  }
}

</mosaic_0001>

<llo_original>
// kernel: tpu_custom_call.1
$region0: #{tpu_custom_call.1}
  #allocation0 [shape = 'u32[]', space=smem, size = 0x4, offset = 0x4, fixed_abs, tag = 'smem constant byte address 0x4 - core index']
  #allocation1 [shape = 'u32[144,128]{1,0:T(1,128)}', space=vmem, size = 0x12000, scoped, tag = 'internal scratch']
  %s0 = inlined_call_operand.vmem [shape: f32[64,32], index: 0, kind: input, shape index: {}]
  %s1 = inlined_call_operand.vmem [shape: bf16[32,32], index: 1, kind: input, shape index: {}]
  %s2 = inlined_call_operand.vmem [shape: f32[1,32], index: 2, kind: input, shape index: {}]
  %s3 = inlined_call_operand.vmem [shape: f32[64,32], index: 3, kind: output, shape index: {}]
  %s4 = sld [smem:[#allocation0]]
  $region45: #{tpu_custom_call.1} parent=0
    _
  %s6 = ssub.s32 1, %s4
  %s7 = scalar_select 0, %s6, %s4
  loop: start=0, step=1, limit=6
  $region2: #{tpu_custom_call.1} parent=0 // loop_pre_header
    _
  $region3: #{tpu_custom_call.1} parent=0 // loop_header
    %s9 = sphi 0, %s13
    %p10 = scmp.ge.s32.totalorder %s9, 6
    %s19 = sphi 0, %s21
    %s22 = sphi 0, %s19
    %s23 = sphi 0, %s22
    %s39 = sphi 0, %s23
    %s43 = sphi 0, %s43
    %s45 = sphi 0, %s43
    %s46 = sphi 0, %s45
    %s60 = sphi 0, %s46
    %s64 = sphi 0, %s64
    %s66 = sphi 0, %s64
    %s67 = sphi 0, %s66
    %s81 = sphi 0, %s67
    %s87 = sphi 0, %s89
    %s90 = sphi 0, %s87
    %s91 = sphi 0, %s90
    %s107 = sphi 0, %s91
  $region4: #{tpu_custom_call.1} parent=0 // loop_header_branch
    %12 = sbr.rel (%p10) target = $region8
  $region5: #{tpu_custom_call.1} parent=0 // loop_body
    %s14 = ssub.s32 %s9, 1
    %s15 = ssub.s32 %s9, 2
    %s16 = sadd.s32 %s9, 1
    %s17 = ssub.s32 %s9, %s16
    %p18 = scmp.eq.s32.totalorder %s17, 0
    %s20 = sadd.s32 %s19, 1
    %s21 = scalar_select %p18, %s19, %s20
    %p24 = pneg %p18
    %p25 = scmp.eq.s32.totalorder %s9, 3
    %p26 = por %p24, %p25
    %p27 = scmp.ne.s32.totalorder %s19, %s22
    %p28 = scmp.eq.s32.totalorder %s9, 0
    %p29 = por %p27, %p28
    %p30 = scmp.ne.s32.totalorder %s19, %s22
    %p31 = scmp.eq.s32.totalorder %s14, 3
    %p32 = por %p30, %p31
    %p33 = scmp.ne.s32.totalorder %s22, %s23
    %p34 = scmp.eq.s32.totalorder %s14, 0
    %p35 = por %p33, %p34
    %p36 = scmp.ne.s32.totalorder %s22, %s23
    %p37 = scmp.eq.s32.totalorder %s15, 3
    %p38 = por %p36, %p37
    %p40 = scmp.ne.s32.totalorder %s23, %s39
    %p41 = scmp.eq.s32.totalorder %s15, 0
    %p42 = por %p40, %p41
    %s44 = sadd.s32 %s43, 1
    %p47 = scmp.eq.s32.totalorder %s9, 3
    %p48 = scmp.ne.s32.totalorder %s43, %s45
    %p49 = scmp.eq.s32.totalorder %s9, 0
    %p50 = por %p48, %p49
    %p51 = scmp.ne.s32.totalorder %s43, %s45
    %p52 = scmp.eq.s32.totalorder %s14, 3
    %p53 = por %p51, %p52
    %p54 = scmp.ne.s32.totalorder %s45, %s46
    %p55 = scmp.eq.s32.totalorder %s14, 0
    %p56 = por %p54, %p55
    %p57 = scmp.ne.s32.totalorder %s45, %s46
    %p58 = scmp.eq.s32.totalorder %s15, 3
    %p59 = por %p57, %p58
    %p61 = scmp.ne.s32.totalorder %s46, %s60
    %p62 = scmp.eq.s32.totalorder %s15, 0
    %p63 = por %p61, %p62
    %s65 = sadd.s32 %s64, 1
    %p68 = scmp.eq.s32.totalorder %s9, 3
    %p69 = scmp.ne.s32.totalorder %s64, %s66
    %p70 = scmp.eq.s32.totalorder %s9, 0
    %p71 = por %p69, %p70
    %p72 = scmp.ne.s32.totalorder %s64, %s66
    %p73 = scmp.eq.s32.totalorder %s14, 3
    %p74 = por %p72, %p73
    %p75 = scmp.ne.s32.totalorder %s66, %s67
    %p76 = scmp.eq.s32.totalorder %s14, 0
    %p77 = por %p75, %p76
    %p78 = scmp.ne.s32.totalorder %s66, %s67
    %p79 = scmp.eq.s32.totalorder %s15, 3
    %p80 = por %p78, %p79
    %p82 = scmp.ne.s32.totalorder %s67, %s81
    %p83 = scmp.eq.s32.totalorder %s15, 0
    %p84 = por %p82, %p83
    %s85 = ssub.s32 %s9, %s16
    %p86 = scmp.eq.s32.totalorder %s85, 0
    %s88 = sadd.s32 %s87, 1
    %s89 = scalar_select %p86, %s87, %s88
    %p92 = pneg %p86
    %p93 = scmp.eq.s32.totalorder %s9, 3
    %p94 = por %p92, %p93
    %p95 = scmp.ne.s32.totalorder %s87, %s90
    %p96 = scmp.eq.s32.totalorder %s9, 0
    %p97 = por %p95, %p96
    %p98 = scmp.ne.s32.totalorder %s87, %s90
    %p99 = scmp.eq.s32.totalorder %s14, 3
    %p100 = por %p98, %p99
    %p101 = scmp.ne.s32.totalorder %s90, %s91
    %p102 = scmp.eq.s32.totalorder %s14, 0
    %p103 = por %p101, %p102
    %p104 = scmp.ne.s32.totalorder %s90, %s91
    %p105 = scmp.eq.s32.totalorder %s15, 3
    %p106 = por %p104, %p105
    %p108 = scmp.ne.s32.totalorder %s91, %s107
    %p109 = scmp.eq.s32.totalorder %s15, 0
    %p110 = por %p108, %p109
    %p111 = scmp.le.s32.totalorder 1, %s9
    %p112 = scmp.lt.s32.totalorder %s9, 5
    %p113 = pnand %p111, %p112
    %p114 = pneg %p113
    // Predicated region
    $region9: #{tpu_custom_call.1} parent=5 // pred_check
      _
    $region10: #{tpu_custom_call.1} parent=5 // pred_check_branch
      %116 = sbr.rel (%p113) target = $region12
    $region11: #{tpu_custom_call.1} parent=5 // pred_region
      %s117 = ssub.s32 %s9, 1
      // Predicated region
      $region13: #{tpu_custom_call.1} parent=11 // pred_check
        %p118 = pneg %p56
      $region14: #{tpu_custom_call.1} parent=11 // pred_check_branch
        %120 = sbr.rel (%p118) target = $region16
      $region15: #{tpu_custom_call.1} parent=11 // pred_region
        _
      $region16: #{tpu_custom_call.1} parent=11 // pred_fallthru
        _
      // Predicated region
      $region17: #{tpu_custom_call.1} parent=11 // pred_check
        %p121 = pneg %p77
      $region18: #{tpu_custom_call.1} parent=11 // pred_check_branch
        %123 = sbr.rel (%p121) target = $region20
      $region19: #{tpu_custom_call.1} parent=11 // pred_region
        _
      $region20: #{tpu_custom_call.1} parent=11 // pred_fallthru
        _
    $region12: #{tpu_custom_call.1} parent=5 // pred_fallthru
      _
    %p124 = scmp.lt.s32.totalorder %s9, 4
    // Predicated region
    $region21: #{tpu_custom_call.1} parent=5 // pred_check
      %p125 = pneg %p124
    $region22: #{tpu_custom_call.1} parent=5 // pred_check_branch
      %127 = sbr.rel (%p125) target = $region24
    $region23: #{tpu_custom_call.1} parent=5 // pred_region
      // Predicated region
      $region25: #{tpu_custom_call.1} parent=23 // pred_check
        %p128 = pneg %p29
      $region26: #{tpu_custom_call.1} parent=23 // pred_check_branch
        %130 = sbr.rel (%p128) target = $region28
      $region27: #{tpu_custom_call.1} parent=23 // pred_region
        %s131 = smul.u32 2, %s9
        %p132 = scmp.lt.s32.totalorder %s131, 7
        %s133 = scalar_select %p132, %s131, 7
        %s134 = smul.addr %s133, 8
        %s135 = scalar_lea.vmem %s0, %s134
        %s136 = smul.u32 2, %s9
      $region28: #{tpu_custom_call.1} parent=23 // pred_fallthru
        _
    $region24: #{tpu_custom_call.1} parent=5 // pred_fallthru
      _
    %p137 = scmp.le.s32.totalorder 1, %s9
    %p138 = scmp.lt.s32.totalorder %s9, 5
    %p139 = pnand %p137, %p138
    %p140 = pneg %p139
    // Predicated region
    $region29: #{tpu_custom_call.1} parent=5 // pred_check
      _
    $region30: #{tpu_custom_call.1} parent=5 // pred_check_branch
      %142 = sbr.rel (%p139) target = $region32
    $region31: #{tpu_custom_call.1} parent=5 // pred_region
      %s143 = ssub.s32 %s9, 1
      %s144 = smul.u32 2, %s14
      %p145 = scmp.lt.s32.totalorder %s144, 7
      %s146 = scalar_select %p145, %s144, 7
      %s147 = smul.addr %s146, 8
      %s148 = scalar_lea.vmem %s0, %s147
      %p149 = pneg %p35
      %p150 = pneg %p32
      %p151 = pneg %p56
      %p152 = pneg %p53
      %p153 = pneg %p77
      %p154 = pneg %p74
      %p155 = pneg %p103
      %p156 = pneg %p100
      %s157 = smul.u32 2, %s14
      %p158 = scmp.lt.s32.totalorder %s157, 7
      %s159 = scalar_select %p158, %s157, 7
      %s160 = smul.addr %s159, 8
      %s161 = scalar_lea.vmem %s3, %s160
      %s162 = smul.u32 2, %s14
      %p163 = scmp.lt.s32.totalorder %s162, 7
      %s164 = scalar_select %p163, %s162, 7
      %s165 = smul.addr %s164, 8
      %s166 = scalar_lea.vmem %s0, %s165
      %s167 = smul.u32 2, %s14
      %s168 = smul.u32 2, %s14
      %p169 = scmp.lt.s32.totalorder %s168, 7
      %s170 = scalar_select %p169, %s168, 7
      %s171 = smul.addr %s170, 8
      %s172 = scalar_lea.vmem %s3, %s171
      %s173 = smul.u32 2, %s14
      %v175 = vld [vmem:[%s166] sm:$0xff]
      %v176 = vld [vmem:[%s166 + $0x8] sm:$0xff]
      %v177 = vpack.c.bf16 %v176, %v175
      %v178 = vld [vmem:[%s1] sm:$0xf]
      %v179 = vld [vmem:[%s1 + $0x4] sm:$0xf]
      %v180 = vld [vmem:[%s1 + $0x8] sm:$0xf]
      %v181 = vld [vmem:[%s1 + $0xc] sm:$0xf]
      %v182 = vld [vmem:[%s2] sm:$0x1]
      %v184 = vlaneseq
      %v185 = vshrl.u32 %v184, 7
      %v186 = vsub.s32 0, %v185
      %v187 = vrot.slane %v182, %v186
      %v193 = vunpack.c.l.b16 %v178
      %v194 = vunpack.c.l.b16 %v179
      %v195 = vunpack.c.l.b16 %v180
      %v196 = vunpack.c.l.b16 %v181
      %v197 = vpack.c.b16 %v194, %v193
      %v198 = vpack.c.b16 %v196, %v195
      %vm201 = vcmask 261120
      %v203 = vsel %vm201, %v177, 0
      %205 = vmatprep.subr.bf16.mxu0 0
      %206 = vmatpush1.bf16.msra.mxu0 %v197
      %207 = vmatprep.subr.bf16.mxu0 0
      %208 = vmatpush1.bf16.msra.mxu0 %v198
      %209 = vmatprep.subr.bf16.mxu0 0
      %210 = vmatpush1.bf16.msra.mxu0 0
      %211 = vmatprep.subr.bf16.mxu0 0
      %212 = vmatpush1.bf16.msra.mxu0 0
      %213 = vmatprep.subr.bf16.mxu0 0
      %214 = vmatpush1.bf16.msra.mxu0 0
      %215 = vmatprep.subr.bf16.mxu0 0
      %216 = vmatpush1.bf16.msra.mxu0 0
      %217 = vmatprep.subr.bf16.mxu0 0
      %218 = vmatpush1.bf16.msra.mxu0 0
      %219 = vmatprep.subr.bf16.mxu0 0
      %220 = vmatpush1.bf16.msra.mxu0 0
      %221 = vmatprep.subr.bf16.mxu0 0
      %222 = vmatpush1.bf16.msra.mxu0 0
      %223 = vmatprep.subr.bf16.mxu0 0
      %224 = vmatpush1.bf16.msra.mxu0 0
      %225 = vmatprep.subr.bf16.mxu0 0
      %226 = vmatpush1.bf16.msra.mxu0 0
      %227 = vmatprep.subr.bf16.mxu0 0
      %228 = vmatpush1.bf16.msra.mxu0 0
      %229 = vmatprep.subr.bf16.mxu0 0
      %230 = vmatpush1.bf16.msra.mxu0 0
      %231 = vmatprep.subr.bf16.mxu0 0
      %232 = vmatpush1.bf16.msra.mxu0 0
      %233 = vmatprep.subr.bf16.mxu0 0
      %234 = vmatpush1.bf16.msra.mxu0 0
      %235 = vmatprep.subr.bf16.mxu0 0
      %236 = vmatpush1.bf16.msra.mxu0 0
      %237 = vmatprep.mubr.bf16.mxu0 0
      %238 = vmatmul.mubr.bf16.gmra.mrb[0].mxu0 %v203
      %v239 = vpop.f32.mrb[0].mxu0
      %v240 = vadd.f32 %v187, %v239
      %v241 = vpop.f32.mrb[0].mxu0
      %v242 = vpop.f32.mrb[0].mxu0
      %v243 = vadd.f32 %v187, %v242
      %v244 = vpop.f32.mrb[0].mxu0
      %245 = vdwg.mxu0
      %246 = vst.msk [vmem:[%s172] sm:$0xff] %vm201, %v240
      %247 = vst.msk [vmem:[%s172 + $0x8] sm:$0xff] %vm201, %v243
      %s248 = smul.u32 2, %s14
      %p249 = scmp.lt.s32.totalorder %s248, 7
      %s250 = scalar_select %p249, %s248, 7
      %s251 = smul.addr %s250, 8
      %s252 = scalar_lea.vmem %s3, %s251
      // Predicated region
      $region33: #{tpu_custom_call.1} parent=31 // pred_check
        %p253 = pneg %p100
      $region34: #{tpu_custom_call.1} parent=31 // pred_check_branch
        %255 = sbr.rel (%p253) target = $region36
      $region35: #{tpu_custom_call.1} parent=31 // pred_region
        %s256 = smul.u32 2, %s14
      $region36: #{tpu_custom_call.1} parent=31 // pred_fallthru
        _
    $region32: #{tpu_custom_call.1} parent=5 // pred_fallthru
      _
    %p257 = scmp.le.s32.totalorder 2, %s9
    // Predicated region
    $region37: #{tpu_custom_call.1} parent=5 // pred_check
      %p258 = pneg %p257
    $region38: #{tpu_custom_call.1} parent=5 // pred_check_branch
      %260 = sbr.rel (%p258) target = $region40
    $region39: #{tpu_custom_call.1} parent=5 // pred_region
      %s261 = ssub.s32 %s9, 2
      // Predicated region
      $region41: #{tpu_custom_call.1} parent=39 // pred_check
        %p262 = pneg %p106
      $region42: #{tpu_custom_call.1} parent=39 // pred_check_branch
        %264 = sbr.rel (%p262) target = $region44
      $region43: #{tpu_custom_call.1} parent=39 // pred_region
        %s265 = smul.u32 2, %s15
        %p266 = scmp.lt.s32.totalorder %s265, 7
        %s267 = scalar_select %p266, %s265, 7
        %s268 = smul.addr %s267, 8
        %s269 = scalar_lea.vmem %s3, %s268
      $region44: #{tpu_custom_call.1} parent=39 // pred_fallthru
        _
    $region40: #{tpu_custom_call.1} parent=5 // pred_fallthru
      _
  $region6: #{tpu_custom_call.1} parent=0 // loop_footer
    %s13 = sadd.s32 1, %s9
  $region7: #{tpu_custom_call.1} parent=0 // loop_footer_branch
    %8 = sbr.rel target = $region3
  $region8: #{tpu_custom_call.1} parent=0 // loop_exit
    _

</llo_original>
